<compile_context>
chip_gen: v5e
topology: v5e:2x2
jax: 0.10.0
libtpu: 0.0.40
codegen_flags: <defaults>
</compile_context>

<pallas_src>
import jax
import jax.numpy as jnp
from jax.experimental import pallas as pl
from jax.experimental.pallas import tpu as pltpu


# ----------------------------- fused Pallas kernel --------------------------

def make_fused_rnn_kernel(n_layers: int, B: int, T: int, H: int, O: int):
    """Build a kernel fusing all tanh-RNN layers + the FC head.

    Ref layout (positional):
      x_ref (B, T, I),
      [wih_l (I_l, H), whh_l (H, H), b_l (1, H)] * n_layers,
      fc_w (H, O), fc_b (1, O),
      out_ref (B*T, O), hidden_ref (n_layers, B, H),
      act_ref VMEM scratch (B, T, H)
    """

    def kernel(*refs):
        x_ref = refs[0]
        layer_refs = refs[1:1 + 3 * n_layers]
        fcw_ref = refs[1 + 3 * n_layers]
        fcb_ref = refs[2 + 3 * n_layers]
        out_ref = refs[3 + 3 * n_layers]
        hidden_ref = refs[4 + 3 * n_layers]
        act_ref = refs[5 + 3 * n_layers]          # VMEM scratch (B, T, H)

        for l in range(n_layers):
            wih = layer_refs[3 * l][...]          # (I_l, H)
            whh = layer_refs[3 * l + 1][...]      # (H, H)
            b = layer_refs[3 * l + 2][...]        # (1, H) = b_ih + b_hh

            if l == 0:
                inp2d = x_ref[...].reshape(B * T, -1)     # batch-major rows
            else:
                inp2d = act_ref[...].reshape(B * T, H)    # previous layer out

            # Hoisted input projection: one large MXU matmul for every
            # timestep at once, bias folded in (broadcast happens once).
            # TODO(synk): cast dot operands to bf16 (keep f32 accumulation)
            # for 2x MXU throughput once hidden sizes are realistic.
            proj = (jnp.dot(inp2d, wih, preferred_element_type=jnp.float32)
                    + b).reshape(B, T, H)                 # (B, T, H)

            h = jnp.zeros((B, H), jnp.float32)            # zero initial hidden
            # Fully unrolled recurrence: only one small h @ Whh matmul per
            # step remains on the serial critical path.
            for t in range(T):
                h = jnp.tanh(
                    proj[:, t, :]
                    + jnp.dot(h, whh, preferred_element_type=jnp.float32))
                act_ref[:, t, :] = h
            hidden_ref[l] = h

        # FC head fused into the same kernel: activations never hit HBM.
        act2d = act_ref[...].reshape(B * T, H)            # batch-major
        out_ref[...] = (jnp.dot(act2d, fcw_ref[...],
                                preferred_element_type=jnp.float32)
                        + fcb_ref[...])

    return kernel


# ----------------------------- wrapper ---------------------------------------

def model_forward(x, params):
    """Equivalent of Model.forward: returns (out, hidden).

    x:      (B, T, input_size), batch_first like the PyTorch module
    out:    (B*T, output_size)
    hidden: (n_layers, B, hidden_dim)
    """
    B, T, _ = x.shape
    n_layers = len(params["rnn"])
    H = params["rnn"][0][1].shape[0]
    fc_w, fc_b = params["fc"]
    O = fc_w.shape[1]

    flat_args = [x.astype(jnp.float32)]
    for (wih, whh, b) in params["rnn"]:
        flat_args += [wih, whh, b]
    flat_args += [fc_w, fc_b]

    vmem = pl.BlockSpec(memory_space=pltpu.MemorySpace.VMEM)
    kernel = make_fused_rnn_kernel(n_layers, B, T, H, O)

    out, hidden = pl.pallas_call(
        kernel,
        out_shape=(jax.ShapeDtypeStruct((B * T, O), jnp.float32),
                   jax.ShapeDtypeStruct((n_layers, B, H), jnp.float32)),
        in_specs=[vmem] * len(flat_args),
        out_specs=(vmem, vmem),
        scratch_shapes=[pltpu.VMEM((B, T, H), jnp.float32)],
    )(*flat_args)
    return out, hidden


def init_params(key, input_size, output_size, hidden_dim, n_layers):
    """Deterministic init mimicking PyTorch's U(-1/sqrt(H), 1/sqrt(H)).

    Weights are stored pre-transposed ((in, out) layout) so the kernel's
    dots need no in-kernel transpose.
    """
    params = {"rnn": [], "fc": None}
    k = 1.0 / jnp.sqrt(hidden_dim)
    keys = jax.random.split(key, n_layers * 4 + 2)
    idx = 0
    for layer in range(n_layers):
        in_dim = input_size if layer == 0 else hidden_dim
        wih = jax.random.uniform(keys[idx], (in_dim, hidden_dim),
                                 jnp.float32, -k, k); idx += 1
        whh = jax.random.uniform(keys[idx], (hidden_dim, hidden_dim),
                                 jnp.float32, -k, k); idx += 1
        b_ih = jax.random.uniform(keys[idx], (hidden_dim,),
                                  jnp.float32, -k, k); idx += 1
        b_hh = jax.random.uniform(keys[idx], (hidden_dim,),
                                  jnp.float32, -k, k); idx += 1
        b = (b_ih + b_hh).reshape(1, hidden_dim)
        params["rnn"].append((wih, whh, b))
    fc_w = jax.random.uniform(keys[idx], (hidden_dim, output_size),
                              jnp.float32, -k, k); idx += 1
    fc_b = jax.random.uniform(keys[idx], (1, output_size),
                              jnp.float32, -k, k)
    params["fc"] = (fc_w, fc_b)
    return params


# ----------------------------- reference (pure JAX) --------------------------

def reference_forward(x, params):
    B, T, _ = x.shape
    inp = x.astype(jnp.float32)
    h_finals = []
    for (wih, whh, b) in params["rnn"]:
        H = whh.shape[0]
        h = jnp.zeros((B, H), jnp.float32)
        outs = []
        for t in range(T):
            h = jnp.tanh(inp[:, t, :] @ wih + h @ whh + b)
            outs.append(h)
        inp = jnp.stack(outs, axis=1)
        h_finals.append(h)
    out_flat = inp.reshape(B * T, -1)
    fc_w, fc_b = params["fc"]
    return out_flat @ fc_w + fc_b, jnp.stack(h_finals, axis=0)


# ----------------------------- main -------------------------------------------

if __name__ == "__main__":
    batch = 2
    seq = 8
    input_size = 16
    hidden_dim = 32
    output_size = 10
    n_layers = 2

    key = jax.random.PRNGKey(0)
    kx, kp = jax.random.split(key)
    x = jax.random.normal(kx, (batch, seq, input_size), jnp.float32)
    params = init_params(kp, input_size, output_size, hidden_dim, n_layers)

    out, hidden = model_forward(x, params)
    out = jax.block_until_ready(out)
    hidden = jax.block_until_ready(hidden)

    ref_out, ref_hidden = reference_forward(x, params)
    assert out.shape == (batch * seq, output_size)
    assert hidden.shape == (n_layers, batch, hidden_dim)
    assert jnp.allclose(out, ref_out, atol=1e-4, rtol=1e-4)
    assert jnp.allclose(hidden, ref_hidden, atol=1e-4, rtol=1e-4)

    print("KERNEL_OK")
</pallas_src>

<mosaic_0001>
module attributes {stable_mosaic.version = 11 : i64} {
  func.func @kernel(%arg0: memref<2x8x16xf32, #tpu.memory_space<vmem>>, %arg1: memref<16x32xf32, #tpu.memory_space<vmem>>, %arg2: memref<32x32xf32, #tpu.memory_space<vmem>>, %arg3: memref<1x32xf32, #tpu.memory_space<vmem>>, %arg4: memref<32x32xf32, #tpu.memory_space<vmem>>, %arg5: memref<32x32xf32, #tpu.memory_space<vmem>>, %arg6: memref<1x32xf32, #tpu.memory_space<vmem>>, %arg7: memref<32x10xf32, #tpu.memory_space<vmem>>, %arg8: memref<1x10xf32, #tpu.memory_space<vmem>>, %arg9: memref<16x10xf32, #tpu.memory_space<vmem>>, %arg10: memref<2x2x32xf32, #tpu.memory_space<vmem>>, %arg11: memref<2x8x32xf32, #tpu.memory_space<vmem>>) attributes {dimension_semantics = [], scalar_prefetch = 0 : i64, scratch_operands = 1 : i64, tpu.core_type = #tpu.core_type<tc>} {
    %c0 = arith.constant 0 : index
    %c0_0 = arith.constant 0 : index
    %0 = vector.load %arg1[%c0, %c0_0] : memref<16x32xf32, #tpu.memory_space<vmem>>, vector<16x32xf32>
    %c0_1 = arith.constant 0 : index
    %c0_2 = arith.constant 0 : index
    %1 = vector.load %arg2[%c0_1, %c0_2] : memref<32x32xf32, #tpu.memory_space<vmem>>, vector<32x32xf32>
    %c0_3 = arith.constant 0 : index
    %c0_4 = arith.constant 0 : index
    %2 = vector.load %arg3[%c0_3, %c0_4] : memref<1x32xf32, #tpu.memory_space<vmem>>, vector<1x32xf32>
    %c0_5 = arith.constant 0 : index
    %c0_6 = arith.constant 0 : index
    %c0_7 = arith.constant 0 : index
    %3 = vector.load %arg0[%c0_5, %c0_6, %c0_7] : memref<2x8x16xf32, #tpu.memory_space<vmem>>, vector<2x8x16xf32>
    %4 = vector.shape_cast %3 : vector<2x8x16xf32> to vector<16x16xf32>
    %cst = arith.constant dense<0.000000e+00> : vector<16x32xf32>
    %5 = tpu.matmul %4, %0, %cst {dimension_numbers = #tpu.dot_dimension_numbers<[1], [0], [0], [1], [0, 0, 1, 1], [], []>} : vector<16x16xf32>, vector<16x32xf32>, vector<16x32xf32> -> vector<16x32xf32>
    %6 = vector.broadcast %2 : vector<1x32xf32> to vector<16x32xf32>
    %7 = arith.addf %5, %6 : vector<16x32xf32>
    %8 = vector.shape_cast %7 : vector<16x32xf32> to vector<2x8x32xf32>
    %cst_8 = arith.constant 0.000000e+00 : f32
    %9 = vector.broadcast %cst_8 : f32 to vector<2x32xf32>
    %10 = vector.extract_strided_slice %8 {offsets = [0, 0, 0], sizes = [2, 1, 32], strides = [1, 1, 1]} : vector<2x8x32xf32> to vector<2x1x32xf32>
    %11 = vector.shape_cast %10 : vector<2x1x32xf32> to vector<2x32xf32>
    %cst_9 = arith.constant dense<0.000000e+00> : vector<2x32xf32>
    %12 = tpu.matmul %9, %1, %cst_9 {dimension_numbers = #tpu.dot_dimension_numbers<[1], [0], [0], [1], [0, 0, 1, 1], [], []>} : vector<2x32xf32>, vector<32x32xf32>, vector<2x32xf32> -> vector<2x32xf32>
    %13 = arith.addf %11, %12 : vector<2x32xf32>
    %14 = math.tanh %13 : vector<2x32xf32>
    %c0_10 = arith.constant 0 : index
    %c0_11 = arith.constant 0 : index
    %c0_12 = arith.constant 0 : index
    %15 = vector.load %arg11[%c0_10, %c0_11, %c0_12] : memref<2x8x32xf32, #tpu.memory_space<vmem>>, vector<2x1x32xf32>
    %16 = vector.shape_cast %15 : vector<2x1x32xf32> to vector<2x32xf32>
    %17 = vector.shape_cast %14 : vector<2x32xf32> to vector<2x1x32xf32>
    tpu.vector_store %arg11[%c0_10, %c0_11, %c0_12], %17 {strides = array<i32>} : memref<2x8x32xf32, #tpu.memory_space<vmem>>, vector<2x1x32xf32>,
    %18 = vector.extract_strided_slice %8 {offsets = [0, 1, 0], sizes = [2, 1, 32], strides = [1, 1, 1]} : vector<2x8x32xf32> to vector<2x1x32xf32>
    %19 = vector.shape_cast %18 : vector<2x1x32xf32> to vector<2x32xf32>
    %cst_13 = arith.constant dense<0.000000e+00> : vector<2x32xf32>
    %20 = tpu.matmul %14, %1, %cst_13 {dimension_numbers = #tpu.dot_dimension_numbers<[1], [0], [0], [1], [0, 0, 1, 1], [], []>} : vector<2x32xf32>, vector<32x32xf32>, vector<2x32xf32> -> vector<2x32xf32>
    %21 = arith.addf %19, %20 : vector<2x32xf32>
    %22 = math.tanh %21 : vector<2x32xf32>
    %c0_14 = arith.constant 0 : index
    %c1 = arith.constant 1 : index
    %c0_15 = arith.constant 0 : index
    %23 = vector.load %arg11[%c0_14, %c1, %c0_15] : memref<2x8x32xf32, #tpu.memory_space<vmem>>, vector<2x1x32xf32>
    %24 = vector.shape_cast %23 : vector<2x1x32xf32> to vector<2x32xf32>
    %25 = vector.shape_cast %22 : vector<2x32xf32> to vector<2x1x32xf32>
    tpu.vector_store %arg11[%c0_14, %c1, %c0_15], %25 {strides = array<i32>} : memref<2x8x32xf32, #tpu.memory_space<vmem>>, vector<2x1x32xf32>,
    %26 = vector.extract_strided_slice %8 {offsets = [0, 2, 0], sizes = [2, 1, 32], strides = [1, 1, 1]} : vector<2x8x32xf32> to vector<2x1x32xf32>
    %27 = vector.shape_cast %26 : vector<2x1x32xf32> to vector<2x32xf32>
    %cst_16 = arith.constant dense<0.000000e+00> : vector<2x32xf32>
    %28 = tpu.matmul %22, %1, %cst_16 {dimension_numbers = #tpu.dot_dimension_numbers<[1], [0], [0], [1], [0, 0, 1, 1], [], []>} : vector<2x32xf32>, vector<32x32xf32>, vector<2x32xf32> -> vector<2x32xf32>
    %29 = arith.addf %27, %28 : vector<2x32xf32>
    %30 = math.tanh %29 : vector<2x32xf32>
    %c0_17 = arith.constant 0 : index
    %c2 = arith.constant 2 : index
    %c0_18 = arith.constant 0 : index
    %31 = vector.load %arg11[%c0_17, %c2, %c0_18] : memref<2x8x32xf32, #tpu.memory_space<vmem>>, vector<2x1x32xf32>
    %32 = vector.shape_cast %31 : vector<2x1x32xf32> to vector<2x32xf32>
    %33 = vector.shape_cast %30 : vector<2x32xf32> to vector<2x1x32xf32>
    tpu.vector_store %arg11[%c0_17, %c2, %c0_18], %33 {strides = array<i32>} : memref<2x8x32xf32, #tpu.memory_space<vmem>>, vector<2x1x32xf32>,
    %34 = vector.extract_strided_slice %8 {offsets = [0, 3, 0], sizes = [2, 1, 32], strides = [1, 1, 1]} : vector<2x8x32xf32> to vector<2x1x32xf32>
    %35 = vector.shape_cast %34 : vector<2x1x32xf32> to vector<2x32xf32>
    %cst_19 = arith.constant dense<0.000000e+00> : vector<2x32xf32>
    %36 = tpu.matmul %30, %1, %cst_19 {dimension_numbers = #tpu.dot_dimension_numbers<[1], [0], [0], [1], [0, 0, 1, 1], [], []>} : vector<2x32xf32>, vector<32x32xf32>, vector<2x32xf32> -> vector<2x32xf32>
    %37 = arith.addf %35, %36 : vector<2x32xf32>
    %38 = math.tanh %37 : vector<2x32xf32>
    %c0_20 = arith.constant 0 : index
    %c3 = arith.constant 3 : index
    %c0_21 = arith.constant 0 : index
    %39 = vector.load %arg11[%c0_20, %c3, %c0_21] : memref<2x8x32xf32, #tpu.memory_space<vmem>>, vector<2x1x32xf32>
    %40 = vector.shape_cast %39 : vector<2x1x32xf32> to vector<2x32xf32>
    %41 = vector.shape_cast %38 : vector<2x32xf32> to vector<2x1x32xf32>
    tpu.vector_store %arg11[%c0_20, %c3, %c0_21], %41 {strides = array<i32>} : memref<2x8x32xf32, #tpu.memory_space<vmem>>, vector<2x1x32xf32>,
    %42 = vector.extract_strided_slice %8 {offsets = [0, 4, 0], sizes = [2, 1, 32], strides = [1, 1, 1]} : vector<2x8x32xf32> to vector<2x1x32xf32>
    %43 = vector.shape_cast %42 : vector<2x1x32xf32> to vector<2x32xf32>
    %cst_22 = arith.constant dense<0.000000e+00> : vector<2x32xf32>
    %44 = tpu.matmul %38, %1, %cst_22 {dimension_numbers = #tpu.dot_dimension_numbers<[1], [0], [0], [1], [0, 0, 1, 1], [], []>} : vector<2x32xf32>, vector<32x32xf32>, vector<2x32xf32> -> vector<2x32xf32>
    %45 = arith.addf %43, %44 : vector<2x32xf32>
    %46 = math.tanh %45 : vector<2x32xf32>
    %c0_23 = arith.constant 0 : index
    %c4 = arith.constant 4 : index
    %c0_24 = arith.constant 0 : index
    %47 = vector.load %arg11[%c0_23, %c4, %c0_24] : memref<2x8x32xf32, #tpu.memory_space<vmem>>, vector<2x1x32xf32>
    %48 = vector.shape_cast %47 : vector<2x1x32xf32> to vector<2x32xf32>
    %49 = vector.shape_cast %46 : vector<2x32xf32> to vector<2x1x32xf32>
    tpu.vector_store %arg11[%c0_23, %c4, %c0_24], %49 {strides = array<i32>} : memref<2x8x32xf32, #tpu.memory_space<vmem>>, vector<2x1x32xf32>,
    %50 = vector.extract_strided_slice %8 {offsets = [0, 5, 0], sizes = [2, 1, 32], strides = [1, 1, 1]} : vector<2x8x32xf32> to vector<2x1x32xf32>
    %51 = vector.shape_cast %50 : vector<2x1x32xf32> to vector<2x32xf32>
    %cst_25 = arith.constant dense<0.000000e+00> : vector<2x32xf32>
    %52 = tpu.matmul %46, %1, %cst_25 {dimension_numbers = #tpu.dot_dimension_numbers<[1], [0], [0], [1], [0, 0, 1, 1], [], []>} : vector<2x32xf32>, vector<32x32xf32>, vector<2x32xf32> -> vector<2x32xf32>
    %53 = arith.addf %51, %52 : vector<2x32xf32>
    %54 = math.tanh %53 : vector<2x32xf32>
    %c0_26 = arith.constant 0 : index
    %c5 = arith.constant 5 : index
    %c0_27 = arith.constant 0 : index
    %55 = vector.load %arg11[%c0_26, %c5, %c0_27] : memref<2x8x32xf32, #tpu.memory_space<vmem>>, vector<2x1x32xf32>
    %56 = vector.shape_cast %55 : vector<2x1x32xf32> to vector<2x32xf32>
    %57 = vector.shape_cast %54 : vector<2x32xf32> to vector<2x1x32xf32>
    tpu.vector_store %arg11[%c0_26, %c5, %c0_27], %57 {strides = array<i32>} : memref<2x8x32xf32, #tpu.memory_space<vmem>>, vector<2x1x32xf32>,
    %58 = vector.extract_strided_slice %8 {offsets = [0, 6, 0], sizes = [2, 1, 32], strides = [1, 1, 1]} : vector<2x8x32xf32> to vector<2x1x32xf32>
    %59 = vector.shape_cast %58 : vector<2x1x32xf32> to vector<2x32xf32>
    %cst_28 = arith.constant dense<0.000000e+00> : vector<2x32xf32>
    %60 = tpu.matmul %54, %1, %cst_28 {dimension_numbers = #tpu.dot_dimension_numbers<[1], [0], [0], [1], [0, 0, 1, 1], [], []>} : vector<2x32xf32>, vector<32x32xf32>, vector<2x32xf32> -> vector<2x32xf32>
    %61 = arith.addf %59, %60 : vector<2x32xf32>
    %62 = math.tanh %61 : vector<2x32xf32>
    %c0_29 = arith.constant 0 : index
    %c6 = arith.constant 6 : index
    %c0_30 = arith.constant 0 : index
    %63 = vector.load %arg11[%c0_29, %c6, %c0_30] : memref<2x8x32xf32, #tpu.memory_space<vmem>>, vector<2x1x32xf32>
    %64 = vector.shape_cast %63 : vector<2x1x32xf32> to vector<2x32xf32>
    %65 = vector.shape_cast %62 : vector<2x32xf32> to vector<2x1x32xf32>
    tpu.vector_store %arg11[%c0_29, %c6, %c0_30], %65 {strides = array<i32>} : memref<2x8x32xf32, #tpu.memory_space<vmem>>, vector<2x1x32xf32>,
    %66 = vector.extract_strided_slice %8 {offsets = [0, 7, 0], sizes = [2, 1, 32], strides = [1, 1, 1]} : vector<2x8x32xf32> to vector<2x1x32xf32>
    %67 = vector.shape_cast %66 : vector<2x1x32xf32> to vector<2x32xf32>
    %cst_31 = arith.constant dense<0.000000e+00> : vector<2x32xf32>
    %68 = tpu.matmul %62, %1, %cst_31 {dimension_numbers = #tpu.dot_dimension_numbers<[1], [0], [0], [1], [0, 0, 1, 1], [], []>} : vector<2x32xf32>, vector<32x32xf32>, vector<2x32xf32> -> vector<2x32xf32>
    %69 = arith.addf %67, %68 : vector<2x32xf32>
    %70 = math.tanh %69 : vector<2x32xf32>
    %c0_32 = arith.constant 0 : index
    %c7 = arith.constant 7 : index
    %c0_33 = arith.constant 0 : index
    %71 = vector.load %arg11[%c0_32, %c7, %c0_33] : memref<2x8x32xf32, #tpu.memory_space<vmem>>, vector<2x1x32xf32>
    %72 = vector.shape_cast %71 : vector<2x1x32xf32> to vector<2x32xf32>
    %73 = vector.shape_cast %70 : vector<2x32xf32> to vector<2x1x32xf32>
    tpu.vector_store %arg11[%c0_32, %c7, %c0_33], %73 {strides = array<i32>} : memref<2x8x32xf32, #tpu.memory_space<vmem>>, vector<2x1x32xf32>,
    %c0_34 = arith.constant 0 : index
    %c0_35 = arith.constant 0 : index
    %c0_36 = arith.constant 0 : index
    %74 = vector.load %arg10[%c0_34, %c0_35, %c0_36] : memref<2x2x32xf32, #tpu.memory_space<vmem>>, vector<1x2x32xf32>
    %75 = vector.shape_cast %74 : vector<1x2x32xf32> to vector<2x32xf32>
    %76 = vector.shape_cast %70 : vector<2x32xf32> to vector<1x2x32xf32>
    tpu.vector_store %arg10[%c0_34, %c0_35, %c0_36], %76 {strides = array<i32>} : memref<2x2x32xf32, #tpu.memory_space<vmem>>, vector<1x2x32xf32>,
    %c0_37 = arith.constant 0 : index
    %c0_38 = arith.constant 0 : index
    %77 = vector.load %arg4[%c0_37, %c0_38] : memref<32x32xf32, #tpu.memory_space<vmem>>, vector<32x32xf32>
    %c0_39 = arith.constant 0 : index
    %c0_40 = arith.constant 0 : index
    %78 = vector.load %arg5[%c0_39, %c0_40] : memref<32x32xf32, #tpu.memory_space<vmem>>, vector<32x32xf32>
    %c0_41 = arith.constant 0 : index
    %c0_42 = arith.constant 0 : index
    %79 = vector.load %arg6[%c0_41, %c0_42] : memref<1x32xf32, #tpu.memory_space<vmem>>, vector<1x32xf32>
    %c0_43 = arith.constant 0 : index
    %c0_44 = arith.constant 0 : index
    %c0_45 = arith.constant 0 : index
    %80 = vector.load %arg11[%c0_43, %c0_44, %c0_45] : memref<2x8x32xf32, #tpu.memory_space<vmem>>, vector<2x8x32xf32>
    %81 = vector.shape_cast %80 : vector<2x8x32xf32> to vector<16x32xf32>
    %cst_46 = arith.constant dense<0.000000e+00> : vector<16x32xf32>
    %82 = tpu.matmul %81, %77, %cst_46 {dimension_numbers = #tpu.dot_dimension_numbers<[1], [0], [0], [1], [0, 0, 1, 1], [], []>} : vector<16x32xf32>, vector<32x32xf32>, vector<16x32xf32> -> vector<16x32xf32>
    %83 = vector.broadcast %79 : vector<1x32xf32> to vector<16x32xf32>
    %84 = arith.addf %82, %83 : vector<16x32xf32>
    %85 = vector.shape_cast %84 : vector<16x32xf32> to vector<2x8x32xf32>
    %cst_47 = arith.constant 0.000000e+00 : f32
    %86 = vector.broadcast %cst_47 : f32 to vector<2x32xf32>
    %87 = vector.extract_strided_slice %85 {offsets = [0, 0, 0], sizes = [2, 1, 32], strides = [1, 1, 1]} : vector<2x8x32xf32> to vector<2x1x32xf32>
    %88 = vector.shape_cast %87 : vector<2x1x32xf32> to vector<2x32xf32>
    %cst_48 = arith.constant dense<0.000000e+00> : vector<2x32xf32>
    %89 = tpu.matmul %86, %78, %cst_48 {dimension_numbers = #tpu.dot_dimension_numbers<[1], [0], [0], [1], [0, 0, 1, 1], [], []>} : vector<2x32xf32>, vector<32x32xf32>, vector<2x32xf32> -> vector<2x32xf32>
    %90 = arith.addf %88, %89 : vector<2x32xf32>
    %91 = math.tanh %90 : vector<2x32xf32>
    %c0_49 = arith.constant 0 : index
    %c0_50 = arith.constant 0 : index
    %c0_51 = arith.constant 0 : index
    %92 = vector.load %arg11[%c0_49, %c0_50, %c0_51] : memref<2x8x32xf32, #tpu.memory_space<vmem>>, vector<2x1x32xf32>
    %93 = vector.shape_cast %92 : vector<2x1x32xf32> to vector<2x32xf32>
    %94 = vector.shape_cast %91 : vector<2x32xf32> to vector<2x1x32xf32>
    tpu.vector_store %arg11[%c0_49, %c0_50, %c0_51], %94 {strides = array<i32>} : memref<2x8x32xf32, #tpu.memory_space<vmem>>, vector<2x1x32xf32>,
    %95 = vector.extract_strided_slice %85 {offsets = [0, 1, 0], sizes = [2, 1, 32], strides = [1, 1, 1]} : vector<2x8x32xf32> to vector<2x1x32xf32>
    %96 = vector.shape_cast %95 : vector<2x1x32xf32> to vector<2x32xf32>
    %cst_52 = arith.constant dense<0.000000e+00> : vector<2x32xf32>
    %97 = tpu.matmul %91, %78, %cst_52 {dimension_numbers = #tpu.dot_dimension_numbers<[1], [0], [0], [1], [0, 0, 1, 1], [], []>} : vector<2x32xf32>, vector<32x32xf32>, vector<2x32xf32> -> vector<2x32xf32>
    %98 = arith.addf %96, %97 : vector<2x32xf32>
    %99 = math.tanh %98 : vector<2x32xf32>
    %c0_53 = arith.constant 0 : index
    %c1_54 = arith.constant 1 : index
    %c0_55 = arith.constant 0 : index
    %100 = vector.load %arg11[%c0_53, %c1_54, %c0_55] : memref<2x8x32xf32, #tpu.memory_space<vmem>>, vector<2x1x32xf32>
    %101 = vector.shape_cast %100 : vector<2x1x32xf32> to vector<2x32xf32>
    %102 = vector.shape_cast %99 : vector<2x32xf32> to vector<2x1x32xf32>
    tpu.vector_store %arg11[%c0_53, %c1_54, %c0_55], %102 {strides = array<i32>} : memref<2x8x32xf32, #tpu.memory_space<vmem>>, vector<2x1x32xf32>,
    %103 = vector.extract_strided_slice %85 {offsets = [0, 2, 0], sizes = [2, 1, 32], strides = [1, 1, 1]} : vector<2x8x32xf32> to vector<2x1x32xf32>
    %104 = vector.shape_cast %103 : vector<2x1x32xf32> to vector<2x32xf32>
    %cst_56 = arith.constant dense<0.000000e+00> : vector<2x32xf32>
    %105 = tpu.matmul %99, %78, %cst_56 {dimension_numbers = #tpu.dot_dimension_numbers<[1], [0], [0], [1], [0, 0, 1, 1], [], []>} : vector<2x32xf32>, vector<32x32xf32>, vector<2x32xf32> -> vector<2x32xf32>
    %106 = arith.addf %104, %105 : vector<2x32xf32>
    %107 = math.tanh %106 : vector<2x32xf32>
    %c0_57 = arith.constant 0 : index
    %c2_58 = arith.constant 2 : index
    %c0_59 = arith.constant 0 : index
    %108 = vector.load %arg11[%c0_57, %c2_58, %c0_59] : memref<2x8x32xf32, #tpu.memory_space<vmem>>, vector<2x1x32xf32>
    %109 = vector.shape_cast %108 : vector<2x1x32xf32> to vector<2x32xf32>
    %110 = vector.shape_cast %107 : vector<2x32xf32> to vector<2x1x32xf32>
    tpu.vector_store %arg11[%c0_57, %c2_58, %c0_59], %110 {strides = array<i32>} : memref<2x8x32xf32, #tpu.memory_space<vmem>>, vector<2x1x32xf32>,
    %111 = vector.extract_strided_slice %85 {offsets = [0, 3, 0], sizes = [2, 1, 32], strides = [1, 1, 1]} : vector<2x8x32xf32> to vector<2x1x32xf32>
    %112 = vector.shape_cast %111 : vector<2x1x32xf32> to vector<2x32xf32>
    %cst_60 = arith.constant dense<0.000000e+00> : vector<2x32xf32>
    %113 = tpu.matmul %107, %78, %cst_60 {dimension_numbers = #tpu.dot_dimension_numbers<[1], [0], [0], [1], [0, 0, 1, 1], [], []>} : vector<2x32xf32>, vector<32x32xf32>, vector<2x32xf32> -> vector<2x32xf32>
    %114 = arith.addf %112, %113 : vector<2x32xf32>
    %115 = math.tanh %114 : vector<2x32xf32>
    %c0_61 = arith.constant 0 : index
    %c3_62 = arith.constant 3 : index
    %c0_63 = arith.constant 0 : index
    %116 = vector.load %arg11[%c0_61, %c3_62, %c0_63] : memref<2x8x32xf32, #tpu.memory_space<vmem>>, vector<2x1x32xf32>
    %117 = vector.shape_cast %116 : vector<2x1x32xf32> to vector<2x32xf32>
    %118 = vector.shape_cast %115 : vector<2x32xf32> to vector<2x1x32xf32>
    tpu.vector_store %arg11[%c0_61, %c3_62, %c0_63], %118 {strides = array<i32>} : memref<2x8x32xf32, #tpu.memory_space<vmem>>, vector<2x1x32xf32>,
    %119 = vector.extract_strided_slice %85 {offsets = [0, 4, 0], sizes = [2, 1, 32], strides = [1, 1, 1]} : vector<2x8x32xf32> to vector<2x1x32xf32>
    %120 = vector.shape_cast %119 : vector<2x1x32xf32> to vector<2x32xf32>
    %cst_64 = arith.constant dense<0.000000e+00> : vector<2x32xf32>
    %121 = tpu.matmul %115, %78, %cst_64 {dimension_numbers = #tpu.dot_dimension_numbers<[1], [0], [0], [1], [0, 0, 1, 1], [], []>} : vector<2x32xf32>, vector<32x32xf32>, vector<2x32xf32> -> vector<2x32xf32>
    %122 = arith.addf %120, %121 : vector<2x32xf32>
    %123 = math.tanh %122 : vector<2x32xf32>
    %c0_65 = arith.constant 0 : index
    %c4_66 = arith.constant 4 : index
    %c0_67 = arith.constant 0 : index
    %124 = vector.load %arg11[%c0_65, %c4_66, %c0_67] : memref<2x8x32xf32, #tpu.memory_space<vmem>>, vector<2x1x32xf32>
    %125 = vector.shape_cast %124 : vector<2x1x32xf32> to vector<2x32xf32>
    %126 = vector.shape_cast %123 : vector<2x32xf32> to vector<2x1x32xf32>
    tpu.vector_store %arg11[%c0_65, %c4_66, %c0_67], %126 {strides = array<i32>} : memref<2x8x32xf32, #tpu.memory_space<vmem>>, vector<2x1x32xf32>,
    %127 = vector.extract_strided_slice %85 {offsets = [0, 5, 0], sizes = [2, 1, 32], strides = [1, 1, 1]} : vector<2x8x32xf32> to vector<2x1x32xf32>
    %128 = vector.shape_cast %127 : vector<2x1x32xf32> to vector<2x32xf32>
    %cst_68 = arith.constant dense<0.000000e+00> : vector<2x32xf32>
    %129 = tpu.matmul %123, %78, %cst_68 {dimension_numbers = #tpu.dot_dimension_numbers<[1], [0], [0], [1], [0, 0, 1, 1], [], []>} : vector<2x32xf32>, vector<32x32xf32>, vector<2x32xf32> -> vector<2x32xf32>
    %130 = arith.addf %128, %129 : vector<2x32xf32>
    %131 = math.tanh %130 : vector<2x32xf32>
    %c0_69 = arith.constant 0 : index
    %c5_70 = arith.constant 5 : index
    %c0_71 = arith.constant 0 : index
    %132 = vector.load %arg11[%c0_69, %c5_70, %c0_71] : memref<2x8x32xf32, #tpu.memory_space<vmem>>, vector<2x1x32xf32>
    %133 = vector.shape_cast %132 : vector<2x1x32xf32> to vector<2x32xf32>
    %134 = vector.shape_cast %131 : vector<2x32xf32> to vector<2x1x32xf32>
    tpu.vector_store %arg11[%c0_69, %c5_70, %c0_71], %134 {strides = array<i32>} : memref<2x8x32xf32, #tpu.memory_space<vmem>>, vector<2x1x32xf32>,
    %135 = vector.extract_strided_slice %85 {offsets = [0, 6, 0], sizes = [2, 1, 32], strides = [1, 1, 1]} : vector<2x8x32xf32> to vector<2x1x32xf32>
    %136 = vector.shape_cast %135 : vector<2x1x32xf32> to vector<2x32xf32>
    %cst_72 = arith.constant dense<0.000000e+00> : vector<2x32xf32>
    %137 = tpu.matmul %131, %78, %cst_72 {dimension_numbers = #tpu.dot_dimension_numbers<[1], [0], [0], [1], [0, 0, 1, 1], [], []>} : vector<2x32xf32>, vector<32x32xf32>, vector<2x32xf32> -> vector<2x32xf32>
    %138 = arith.addf %136, %137 : vector<2x32xf32>
    %139 = math.tanh %138 : vector<2x32xf32>
    %c0_73 = arith.constant 0 : index
    %c6_74 = arith.constant 6 : index
    %c0_75 = arith.constant 0 : index
    %140 = vector.load %arg11[%c0_73, %c6_74, %c0_75] : memref<2x8x32xf32, #tpu.memory_space<vmem>>, vector<2x1x32xf32>
    %141 = vector.shape_cast %140 : vector<2x1x32xf32> to vector<2x32xf32>
    %142 = vector.shape_cast %139 : vector<2x32xf32> to vector<2x1x32xf32>
    tpu.vector_store %arg11[%c0_73, %c6_74, %c0_75], %142 {strides = array<i32>} : memref<2x8x32xf32, #tpu.memory_space<vmem>>, vector<2x1x32xf32>,
    %143 = vector.extract_strided_slice %85 {offsets = [0, 7, 0], sizes = [2, 1, 32], strides = [1, 1, 1]} : vector<2x8x32xf32> to vector<2x1x32xf32>
    %144 = vector.shape_cast %143 : vector<2x1x32xf32> to vector<2x32xf32>
    %cst_76 = arith.constant dense<0.000000e+00> : vector<2x32xf32>
    %145 = tpu.matmul %139, %78, %cst_76 {dimension_numbers = #tpu.dot_dimension_numbers<[1], [0], [0], [1], [0, 0, 1, 1], [], []>} : vector<2x32xf32>, vector<32x32xf32>, vector<2x32xf32> -> vector<2x32xf32>
    %146 = arith.addf %144, %145 : vector<2x32xf32>
    %147 = math.tanh %146 : vector<2x32xf32>
    %c0_77 = arith.constant 0 : index
    %c7_78 = arith.constant 7 : index
    %c0_79 = arith.constant 0 : index
    %148 = vector.load %arg11[%c0_77, %c7_78, %c0_79] : memref<2x8x32xf32, #tpu.memory_space<vmem>>, vector<2x1x32xf32>
    %149 = vector.shape_cast %148 : vector<2x1x32xf32> to vector<2x32xf32>
    %150 = vector.shape_cast %147 : vector<2x32xf32> to vector<2x1x32xf32>
    tpu.vector_store %arg11[%c0_77, %c7_78, %c0_79], %150 {strides = array<i32>} : memref<2x8x32xf32, #tpu.memory_space<vmem>>, vector<2x1x32xf32>,
    %c1_80 = arith.constant 1 : index
    %c0_81 = arith.constant 0 : index
    %c0_82 = arith.constant 0 : index
    %151 = vector.load %arg10[%c1_80, %c0_81, %c0_82] : memref<2x2x32xf32, #tpu.memory_space<vmem>>, vector<1x2x32xf32>
    %152 = vector.shape_cast %151 : vector<1x2x32xf32> to vector<2x32xf32>
    %153 = vector.shape_cast %147 : vector<2x32xf32> to vector<1x2x32xf32>
    tpu.vector_store %arg10[%c1_80, %c0_81, %c0_82], %153 {strides = array<i32>} : memref<2x2x32xf32, #tpu.memory_space<vmem>>, vector<1x2x32xf32>,
    %c0_83 = arith.constant 0 : index
    %c0_84 = arith.constant 0 : index
    %c0_85 = arith.constant 0 : index
    %154 = vector.load %arg11[%c0_83, %c0_84, %c0_85] : memref<2x8x32xf32, #tpu.memory_space<vmem>>, vector<2x8x32xf32>
    %155 = vector.shape_cast %154 : vector<2x8x32xf32> to vector<16x32xf32>
    %c0_86 = arith.constant 0 : index
    %c0_87 = arith.constant 0 : index
    %156 = vector.load %arg7[%c0_86, %c0_87] : memref<32x10xf32, #tpu.memory_space<vmem>>, vector<32x10xf32>
    %cst_88 = arith.constant dense<0.000000e+00> : vector<16x10xf32>
    %157 = tpu.matmul %155, %156, %cst_88 {dimension_numbers = #tpu.dot_dimension_numbers<[1], [0], [0], [1], [0, 0, 1, 1], [], []>} : vector<16x32xf32>, vector<32x10xf32>, vector<16x10xf32> -> vector<16x10xf32>
    %c0_89 = arith.constant 0 : index
    %c0_90 = arith.constant 0 : index
    %158 = vector.load %arg8[%c0_89, %c0_90] : memref<1x10xf32, #tpu.memory_space<vmem>>, vector<1x10xf32>
    %159 = vector.broadcast %158 : vector<1x10xf32> to vector<16x10xf32>
    %160 = arith.addf %157, %159 : vector<16x10xf32>
    %c0_91 = arith.constant 0 : index
    %c0_92 = arith.constant 0 : index
    %161 = vector.load %arg9[%c0_91, %c0_92] : memref<16x10xf32, #tpu.memory_space<vmem>>, vector<16x10xf32>
    tpu.vector_store %arg9[%c0_91, %c0_92], %160 {strides = array<i32>} : memref<16x10xf32, #tpu.memory_space<vmem>>, vector<16x10xf32>,
    return
  }
}

</mosaic_0001>

<llo_original>
// kernel: tpu_custom_call.1
$region0: #{tpu_custom_call.1}
  #allocation0 [shape = 'u32[]', space=smem, size = 0x4, offset = 0x4, fixed_abs, tag = 'smem constant byte address 0x4 - core index']
  #allocation1 [shape = 'u32[72,128]{1,0:T(1,128)}', space=vmem, size = 0x9000, scoped, tag = 'internal scratch']
  #allocation2 [shape = 'f32[2,8,32]{2,1,0:T(8,128)}', space=vmem, size = 0x2000, scoped, tag = 'scratch operand']
  %s0 = inlined_call_operand.vmem [shape: f32[2,8,16], index: 0, kind: input, shape index: {}]
  %s1 = inlined_call_operand.hbm [shape: f32[16,32], index: 1, kind: input, shape index: {}]
  %s2 = inlined_call_operand.vmem [shape: f32[32,32], index: 2, kind: input, shape index: {}]
  %s3 = inlined_call_operand.vmem [shape: f32[1,32], index: 3, kind: input, shape index: {}]
  %s4 = inlined_call_operand.hbm [shape: f32[32,32], index: 4, kind: input, shape index: {}]
  %s5 = inlined_call_operand.hbm [shape: f32[32,32], index: 5, kind: input, shape index: {}]
  %s6 = inlined_call_operand.vmem [shape: f32[1,32], index: 6, kind: input, shape index: {}]
  %s7 = inlined_call_operand.vmem [shape: f32[32,10], index: 7, kind: input, shape index: {}]
  %s8 = inlined_call_operand.vmem [shape: f32[1,10], index: 8, kind: input, shape index: {}]
  %s9 = inlined_call_operand.hbm [shape: f32[16,10], index: 9, kind: output, shape index: {0}]
  %s10 = inlined_call_operand.hbm [shape: f32[2,2,32], index: 10, kind: output, shape index: {1}]
  %11 = xla_tuple %s9, %s10
  %s12 = sld [smem:[#allocation0]]
  $region66: #{tpu_custom_call.1} parent=0
    _
  %s14 = ssub.s32 1, %s12
  %s15 = scalar_select 0, %s14, %s12
  $region1: #{tpu_custom_call.1} parent=0
    #allocation3 [shape = 'u8[8192]{0}', space=vmem, size = 0x2000, scoped, tag = 'input window, operand 1, single buffered']
    #allocation4 [shape = 's32[1]{0}', space=sflag, size = 0x4, scoped, tag = 'scoped memory for tpu_custom_call.1']
    #allocation5 [shape = 's32[1]{0}', space=sflag, size = 0x4, scoped, tag = 'scoped memory for tpu_custom_call.1']
    #allocation6 [shape = 'u8[16384]{0}', space=vmem, size = 0x4000, scoped, tag = 'input window, operand 4, single buffered']
    #allocation7 [shape = 's32[1]{0}', space=sflag, size = 0x4, scoped, tag = 'scoped memory for tpu_custom_call.1']
    #allocation8 [shape = 'u8[16384]{0}', space=vmem, size = 0x4000, scoped, tag = 'input window, operand 5, single buffered']
    #allocation9 [shape = 'u8[8192]{0}', space=vmem, size = 0x2000, scoped, tag = 'output window, operand 0, single buffered']
    #allocation10 [shape = 'u8[2048]{0}', space=vmem, size = 0x800, scoped, tag = 'output window, operand 1, single buffered']
    #allocation11 [shape = 's32[1]{0}', space=sflag, size = 0x4, scoped, tag = 'scoped memory for tpu_custom_call.1']
    %16 = vsyncpa [#allocation4], 0
    %17 = vsyncpa [#allocation7], 0
    %18 = vsyncpa [#allocation5], 0
    %19 = vsyncpa [#allocation11], 0
    // Predicated region
    $region2: #{tpu_custom_call.1} parent=1 // pred_check
      _
    $region3: #{tpu_custom_call.1} parent=1 // pred_check_branch
      %21 = sbr.rel (0) target = $region5
    $region4: #{tpu_custom_call.1} parent=1 // pred_region
      _
    $region5: #{tpu_custom_call.1} parent=1 // pred_fallthru
      _
    // Predicated region
    $region6: #{tpu_custom_call.1} parent=1 // pred_check
      _
    $region7: #{tpu_custom_call.1} parent=1 // pred_check_branch
      %23 = sbr.rel (0) target = $region9
    $region8: #{tpu_custom_call.1} parent=1 // pred_region
      %25 = vsyncadd [#allocation4], 0
      %s26 = sshll.u32 %s1, 4
      %s27 = int_to_ptr.hbm [resolvable:$true] %s26
      %s28 = sshll.u32 [#allocation3], 4
      %s29 = int_to_ptr.vmem [resolvable:$true] %s28
      %34 = dma.hbm_to_vmem [thread:$0]  %s27, 256, %s29, [#allocation4], 128, 128, 8
    $region9: #{tpu_custom_call.1} parent=1 // pred_fallthru
      _
    // Predicated region
    $region10: #{tpu_custom_call.1} parent=1 // pred_check
      _
    $region11: #{tpu_custom_call.1} parent=1 // pred_check_branch
      %36 = sbr.rel (0) target = $region13
    $region12: #{tpu_custom_call.1} parent=1 // pred_region
      _
    $region13: #{tpu_custom_call.1} parent=1 // pred_fallthru
      _
    // Predicated region
    $region14: #{tpu_custom_call.1} parent=1 // pred_check
      _
    $region15: #{tpu_custom_call.1} parent=1 // pred_check_branch
      %38 = sbr.rel (0) target = $region17
    $region16: #{tpu_custom_call.1} parent=1 // pred_region
      _
    $region17: #{tpu_custom_call.1} parent=1 // pred_fallthru
      _
    // Predicated region
    $region18: #{tpu_custom_call.1} parent=1 // pred_check
      _
    $region19: #{tpu_custom_call.1} parent=1 // pred_check_branch
      %40 = sbr.rel (0) target = $region21
    $region20: #{tpu_custom_call.1} parent=1 // pred_region
      %42 = vsyncadd [#allocation7], 0
      %s43 = sshll.u32 %s4, 4
      %s44 = int_to_ptr.hbm [resolvable:$true] %s43
      %s45 = sshll.u32 [#allocation6], 4
      %s46 = int_to_ptr.vmem [resolvable:$true] %s45
      %51 = dma.hbm_to_vmem [thread:$0]  %s44, 512, %s46, [#allocation7], 128, 128, 8
    $region21: #{tpu_custom_call.1} parent=1 // pred_fallthru
      _
    // Predicated region
    $region22: #{tpu_custom_call.1} parent=1 // pred_check
      _
    $region23: #{tpu_custom_call.1} parent=1 // pred_check_branch
      %53 = sbr.rel (0) target = $region25
    $region24: #{tpu_custom_call.1} parent=1 // pred_region
      %55 = vsyncadd [#allocation7], 0
      %s56 = sshll.u32 %s5, 4
      %s57 = int_to_ptr.hbm [resolvable:$true] %s56
      %s58 = sshll.u32 [#allocation8], 4
      %s59 = int_to_ptr.vmem [resolvable:$true] %s58
      %64 = dma.hbm_to_vmem [thread:$0]  %s57, 512, %s59, [#allocation7], 128, 128, 8
    $region25: #{tpu_custom_call.1} parent=1 // pred_fallthru
      _
    // Predicated region
    $region26: #{tpu_custom_call.1} parent=1 // pred_check
      _
    $region27: #{tpu_custom_call.1} parent=1 // pred_check_branch
      %66 = sbr.rel (0) target = $region29
    $region28: #{tpu_custom_call.1} parent=1 // pred_region
      _
    $region29: #{tpu_custom_call.1} parent=1 // pred_fallthru
      _
    // Predicated region
    $region30: #{tpu_custom_call.1} parent=1 // pred_check
      _
    $region31: #{tpu_custom_call.1} parent=1 // pred_check_branch
      %68 = sbr.rel (0) target = $region33
    $region32: #{tpu_custom_call.1} parent=1 // pred_region
      _
    $region33: #{tpu_custom_call.1} parent=1 // pred_fallthru
      _
    // Predicated region
    $region34: #{tpu_custom_call.1} parent=1 // pred_check
      _
    $region35: #{tpu_custom_call.1} parent=1 // pred_check_branch
      %70 = sbr.rel (0) target = $region37
    $region36: #{tpu_custom_call.1} parent=1 // pred_region
      _
    $region37: #{tpu_custom_call.1} parent=1 // pred_fallthru
      _
    // Predicated region
    $region38: #{tpu_custom_call.1} parent=1 // pred_check
      _
    $region39: #{tpu_custom_call.1} parent=1 // pred_check_branch
      %72 = sbr.rel (0) target = $region41
    $region40: #{tpu_custom_call.1} parent=1 // pred_region
      %74 = dma.done [#allocation4], 256
    $region41: #{tpu_custom_call.1} parent=1 // pred_fallthru
      _
    // Predicated region
    $region42: #{tpu_custom_call.1} parent=1 // pred_check
      _
    $region43: #{tpu_custom_call.1} parent=1 // pred_check_branch
      %76 = sbr.rel (0) target = $region45
    $region44: #{tpu_custom_call.1} parent=1 // pred_region
      %78 = dma.done [#allocation7], 512
    $region45: #{tpu_custom_call.1} parent=1 // pred_fallthru
      _
    // Predicated region
    $region46: #{tpu_custom_call.1} parent=1 // pred_check
      _
    $region47: #{tpu_custom_call.1} parent=1 // pred_check_branch
      %80 = sbr.rel (0) target = $region49
    $region48: #{tpu_custom_call.1} parent=1 // pred_region
      %82 = dma.done [#allocation7], 512
    $region49: #{tpu_custom_call.1} parent=1 // pred_fallthru
      _
    %v83 = vld [vmem:[#allocation3] sm:$0xff]
    %v84 = vld [vmem:[#allocation3 + $0x8] sm:$0xff]
    %v85 = vld [vmem:[%s2] sm:$0xff]
    %v86 = vld [vmem:[%s2 + $0x8] sm:$0xff]
    %v87 = vld [vmem:[%s2 + $0x10] sm:$0xff]
    %v88 = vld [vmem:[%s2 + $0x18] sm:$0xff]
    %v89 = vld [vmem:[%s3] sm:$0x1]
    %v90 = vld [vmem:[%s0] sm:$0xff]
    %v91 = vld [vmem:[%s0 + $0x8] sm:$0xff]
    %v93 = vperm.slane %v89, 0
    %vm95 = vcmask 130048
    %v97 = vsel %vm95, %v90, 0
    %v100 = vsel %vm95, %v91, 0
    %102 = vmatpush.msra.mxu0 0.0
    %103 = vmatpush.msra.mxu0 0.0
    %104 = vmatpush.msra.mxu0 0.0
    %105 = vmatpush.msra.mxu0 0.0
    %106 = vmatpush.msra.mxu0 0.0
    %107 = vmatpush.msra.mxu0 0.0
    %108 = vmatpush.msra.mxu0 0.0
    %109 = vmatpush.msra.mxu0 0.0
    %110 = vmatpush.msra.mxu0 0.0
    %111 = vmatpush.msra.mxu0 0.0
    %112 = vmatpush.msra.mxu0 0.0
    %113 = vmatpush.msra.mxu0 0.0
    %114 = vmatpush.msra.mxu0 0.0
    %115 = vmatpush.msra.mxu0 0.0
    %116 = vmatpush.msra.mxu0 %v84
    %117 = vmatpush.msra.mxu0 %v83
    %118 = vmatmul.f32.gmra.mxu0 %v97
    %v119 = vpop.f32.mrf.mxu0
    %v120 = vadd.f32 %v93, %v119
    %121 = vmatmul.f32.gmra.mxu0 %v100
    %v122 = vpop.f32.mrf.mxu0
    %v123 = vadd.f32 %v93, %v122
    %124 = vdwg.mxu0
    %vm125 = vcmask 261120
    %v127 = vsel %vm125, 0.0, 0
    %129 = vmatpush.msra.mxu0 0.0
    %130 = vmatpush.msra.mxu0 0.0
    %131 = vmatpush.msra.mxu0 0.0
    %132 = vmatpush.msra.mxu0 0.0
    %133 = vmatpush.msra.mxu0 0.0
    %134 = vmatpush.msra.mxu0 0.0
    %135 = vmatpush.msra.mxu0 0.0
    %136 = vmatpush.msra.mxu0 0.0
    %137 = vmatpush.msra.mxu0 0.0
    %138 = vmatpush.msra.mxu0 0.0
    %139 = vmatpush.msra.mxu0 0.0
    %140 = vmatpush.msra.mxu0 0.0
    %141 = vmatpush.msra.mxu0 %v88
    %142 = vmatpush.msra.mxu0 %v87
    %143 = vmatpush.msra.mxu0 %v86
    %144 = vmatpush.msra.mxu0 %v85
    %145 = vmatmul.f32.gmra.mxu0 %v127
    %v146 = vpop.f32.mrf.mxu0
    %v147 = vadd.f32 0.0, %v146
    %148 = vdwg.mxu0
    %v150 = vrot.slane %v147, 1
    %v153 = vadd.f32 %v120, %v147
    %v154 = vadd.f32 %v123, %v150
    %v155 = vtanh.pop %v153
    %v156 = vtanh.pop %v154
    %vm157 = vcmask 253952
    %158 = vst.msk [vmem:[#allocation2] sm:$0x1] %vm157, %v155
    %159 = vst.msk [vmem:[#allocation2 + $0x8] sm:$0x1] %vm157, %v156
    %v162 = vrot.slane %v156, 7
    %vm163 = vcmask 1041409
    %v164 = vsel %vm163, %v162, %v155
    %v165 = vsel %vm125, %v164, 0
    %167 = vmatpush.msra.mxu0 0.0
    %168 = vmatpush.msra.mxu0 0.0
    %169 = vmatpush.msra.mxu0 0.0
    %170 = vmatpush.msra.mxu0 0.0
    %171 = vmatpush.msra.mxu0 0.0
    %172 = vmatpush.msra.mxu0 0.0
    %173 = vmatpush.msra.mxu0 0.0
    %174 = vmatpush.msra.mxu0 0.0
    %175 = vmatpush.msra.mxu0 0.0
    %176 = vmatpush.msra.mxu0 0.0
    %177 = vmatpush.msra.mxu0 0.0
    %178 = vmatpush.msra.mxu0 0.0
    %179 = vmatpush.msra.mxu0 %v88
    %180 = vmatpush.msra.mxu0 %v87
    %181 = vmatpush.msra.mxu0 %v86
    %182 = vmatpush.msra.mxu0 %v85
    %183 = vmatmul.f32.gmra.mxu0 %v165
    %v184 = vpop.f32.mrf.mxu0
    %v185 = vadd.f32 0.0, %v184
    %186 = vdwg.mxu0
    %v188 = vrot.slane %v185, 7
    %v191 = vadd.f32 %v120, %v188
    %v192 = vadd.f32 %v123, %v185
    %v193 = vtanh.pop %v191
    %v194 = vtanh.pop %v192
    %vm195 = vcmask 254977
    %196 = vst.msk [vmem:[#allocation2] sm:$0x2] %vm195, %v193
    %197 = vst.msk [vmem:[#allocation2 + $0x8] sm:$0x2] %vm195, %v194
    %v200 = vrot.slane %v193, 1
    %v201 = vsel %vm163, %v194, %v200
    %v202 = vsel %vm125, %v201, 0
    %204 = vmatpush.msra.mxu0 0.0
    %205 = vmatpush.msra.mxu0 0.0
    %206 = vmatpush.msra.mxu0 0.0
    %207 = vmatpush.msra.mxu0 0.0
    %208 = vmatpush.msra.mxu0 0.0
    %209 = vmatpush.msra.mxu0 0.0
    %210 = vmatpush.msra.mxu0 0.0
    %211 = vmatpush.msra.mxu0 0.0
    %212 = vmatpush.msra.mxu0 0.0
    %213 = vmatpush.msra.mxu0 0.0
    %214 = vmatpush.msra.mxu0 0.0
    %215 = vmatpush.msra.mxu0 0.0
    %216 = vmatpush.msra.mxu0 %v88
    %217 = vmatpush.msra.mxu0 %v87
    %218 = vmatpush.msra.mxu0 %v86
    %219 = vmatpush.msra.mxu0 %v85
    %220 = vmatmul.f32.gmra.mxu0 %v202
    %v221 = vpop.f32.mrf.mxu0
    %v222 = vadd.f32 0.0, %v221
    %223 = vdwg.mxu0
    %v225 = vrot.slane %v222, 6
    %v226 = vrot.slane %v222, 7
    %v229 = vadd.f32 %v120, %v225
    %v230 = vadd.f32 %v123, %v226
    %v231 = vtanh.pop %v229
    %v232 = vtanh.pop %v230
    %vm233 = vcmask 256002
    %234 = vst.msk [vmem:[#allocation2] sm:$0x4] %vm233, %v231
    %235 = vst.msk [vmem:[#allocation2 + $0x8] sm:$0x4] %vm233, %v232
    %v238 = vrot.slane %v231, 2
    %v239 = vrot.slane %v232, 1
    %v240 = vsel %vm163, %v239, %v238
    %v241 = vsel %vm125, %v240, 0
    %243 = vmatpush.msra.mxu0 0.0
    %244 = vmatpush.msra.mxu0 0.0
    %245 = vmatpush.msra.mxu0 0.0
    %246 = vmatpush.msra.mxu0 0.0
    %247 = vmatpush.msra.mxu0 0.0
    %248 = vmatpush.msra.mxu0 0.0
    %249 = vmatpush.msra.mxu0 0.0
    %250 = vmatpush.msra.mxu0 0.0
    %251 = vmatpush.msra.mxu0 0.0
    %252 = vmatpush.msra.mxu0 0.0
    %253 = vmatpush.msra.mxu0 0.0
    %254 = vmatpush.msra.mxu0 0.0
    %255 = vmatpush.msra.mxu0 %v88
    %256 = vmatpush.msra.mxu0 %v87
    %257 = vmatpush.msra.mxu0 %v86
    %258 = vmatpush.msra.mxu0 %v85
    %259 = vmatmul.f32.gmra.mxu0 %v241
    %v260 = vpop.f32.mrf.mxu0
    %v261 = vadd.f32 0.0, %v260
    %262 = vdwg.mxu0
    %v264 = vrot.slane %v261, 5
    %v265 = vrot.slane %v261, 6
    %v268 = vadd.f32 %v120, %v264
    %v269 = vadd.f32 %v123, %v265
    %v270 = vtanh.pop %v268
    %v271 = vtanh.pop %v269
    %vm272 = vcmask 257027
    %273 = vst.msk [vmem:[#allocation2] sm:$0x8] %vm272, %v270
    %274 = vst.msk [vmem:[#allocation2 + $0x8] sm:$0x8] %vm272, %v271
    %v277 = vrot.slane %v270, 3
    %v278 = vrot.slane %v271, 2
    %v279 = vsel %vm163, %v278, %v277
    %v280 = vsel %vm125, %v279, 0
    %282 = vmatpush.msra.mxu0 0.0
    %283 = vmatpush.msra.mxu0 0.0
    %284 = vmatpush.msra.mxu0 0.0
    %285 = vmatpush.msra.mxu0 0.0
    %286 = vmatpush.msra.mxu0 0.0
    %287 = vmatpush.msra.mxu0 0.0
    %288 = vmatpush.msra.mxu0 0.0
    %289 = vmatpush.msra.mxu0 0.0
    %290 = vmatpush.msra.mxu0 0.0
    %291 = vmatpush.msra.mxu0 0.0
    %292 = vmatpush.msra.mxu0 0.0
    %293 = vmatpush.msra.mxu0 0.0
    %294 = vmatpush.msra.mxu0 %v88
    %295 = vmatpush.msra.mxu0 %v87
    %296 = vmatpush.msra.mxu0 %v86
    %297 = vmatpush.msra.mxu0 %v85
    %298 = vmatmul.f32.gmra.mxu0 %v280
    %v299 = vpop.f32.mrf.mxu0
    %v300 = vadd.f32 0.0, %v299
    %301 = vdwg.mxu0
    %v303 = vrot.slane %v300, 4
    %v304 = vrot.slane %v300, 5
    %v307 = vadd.f32 %v120, %v303
    %v308 = vadd.f32 %v123, %v304
    %v309 = vtanh.pop %v307
    %v310 = vtanh.pop %v308
    %vm311 = vcmask 258052
    %312 = vst.msk [vmem:[#allocation2] sm:$0x10] %vm311, %v309
    %313 = vst.msk [vmem:[#allocation2 + $0x8] sm:$0x10] %vm311, %v310
    %v316 = vrot.slane %v309, 4
    %v317 = vrot.slane %v310, 3
    %v318 = vsel %vm163, %v317, %v316
    %v319 = vsel %vm125, %v318, 0
    %321 = vmatpush.msra.mxu0 0.0
    %322 = vmatpush.msra.mxu0 0.0
    %323 = vmatpush.msra.mxu0 0.0
    %324 = vmatpush.msra.mxu0 0.0
    %325 = vmatpush.msra.mxu0 0.0
    %326 = vmatpush.msra.mxu0 0.0
    %327 = vmatpush.msra.mxu0 0.0
    %328 = vmatpush.msra.mxu0 0.0
    %329 = vmatpush.msra.mxu0 0.0
    %330 = vmatpush.msra.mxu0 0.0
    %331 = vmatpush.msra.mxu0 0.0
    %332 = vmatpush.msra.mxu0 0.0
    %333 = vmatpush.msra.mxu0 %v88
    %334 = vmatpush.msra.mxu0 %v87
    %335 = vmatpush.msra.mxu0 %v86
    %336 = vmatpush.msra.mxu0 %v85
    %337 = vmatmul.f32.gmra.mxu0 %v319
    %v338 = vpop.f32.mrf.mxu0
    %v339 = vadd.f32 0.0, %v338
    %340 = vdwg.mxu0
    %v342 = vrot.slane %v339, 3
    %v343 = vrot.slane %v339, 4
    %v346 = vadd.f32 %v120, %v342
    %v347 = vadd.f32 %v123, %v343
    %v348 = vtanh.pop %v346
    %v349 = vtanh.pop %v347
    %vm350 = vcmask 259077
    %351 = vst.msk [vmem:[#allocation2] sm:$0x20] %vm350, %v348
    %352 = vst.msk [vmem:[#allocation2 + $0x8] sm:$0x20] %vm350, %v349
    %v355 = vrot.slane %v348, 5
    %v356 = vrot.slane %v349, 4
    %v357 = vsel %vm163, %v356, %v355
    %v358 = vsel %vm125, %v357, 0
    %360 = vmatpush.msra.mxu0 0.0
    %361 = vmatpush.msra.mxu0 0.0
    %362 = vmatpush.msra.mxu0 0.0
    %363 = vmatpush.msra.mxu0 0.0
    %364 = vmatpush.msra.mxu0 0.0
    %365 = vmatpush.msra.mxu0 0.0
    %366 = vmatpush.msra.mxu0 0.0
    %367 = vmatpush.msra.mxu0 0.0
    %368 = vmatpush.msra.mxu0 0.0
    %369 = vmatpush.msra.mxu0 0.0
    %370 = vmatpush.msra.mxu0 0.0
    %371 = vmatpush.msra.mxu0 0.0
    %372 = vmatpush.msra.mxu0 %v88
    %373 = vmatpush.msra.mxu0 %v87
    %374 = vmatpush.msra.mxu0 %v86
    %375 = vmatpush.msra.mxu0 %v85
    %376 = vmatmul.f32.gmra.mxu0 %v358
    %v377 = vpop.f32.mrf.mxu0
    %v378 = vadd.f32 0.0, %v377
    %379 = vdwg.mxu0
    %v381 = vrot.slane %v378, 2
    %v382 = vrot.slane %v378, 3
    %v385 = vadd.f32 %v120, %v381
    %v386 = vadd.f32 %v123, %v382
    %v387 = vtanh.pop %v385
    %v388 = vtanh.pop %v386
    %vm389 = vcmask 260102
    %390 = vst.msk [vmem:[#allocation2] sm:$0x40] %vm389, %v387
    %391 = vst.msk [vmem:[#allocation2 + $0x8] sm:$0x40] %vm389, %v388
    %v394 = vrot.slane %v387, 6
    %v395 = vrot.slane %v388, 5
    %v396 = vsel %vm163, %v395, %v394
    %v397 = vsel %vm125, %v396, 0
    %399 = vmatpush.msra.mxu0 0.0
    %400 = vmatpush.msra.mxu0 0.0
    %401 = vmatpush.msra.mxu0 0.0
    %402 = vmatpush.msra.mxu0 0.0
    %403 = vmatpush.msra.mxu0 0.0
    %404 = vmatpush.msra.mxu0 0.0
    %405 = vmatpush.msra.mxu0 0.0
    %406 = vmatpush.msra.mxu0 0.0
    %407 = vmatpush.msra.mxu0 0.0
    %408 = vmatpush.msra.mxu0 0.0
    %409 = vmatpush.msra.mxu0 0.0
    %410 = vmatpush.msra.mxu0 0.0
    %411 = vmatpush.msra.mxu0 %v88
    %412 = vmatpush.msra.mxu0 %v87
    %413 = vmatpush.msra.mxu0 %v86
    %414 = vmatpush.msra.mxu0 %v85
    %415 = vmatmul.f32.gmra.mxu0 %v397
    %v416 = vpop.f32.mrf.mxu0
    %v417 = vadd.f32 0.0, %v416
    %418 = vdwg.mxu0
    %v420 = vrot.slane %v417, 1
    %v421 = vrot.slane %v417, 2
    %v424 = vadd.f32 %v120, %v420
    %v425 = vadd.f32 %v123, %v421
    %v426 = vtanh.pop %v424
    %v427 = vtanh.pop %v425
    %vm428 = vcmask 261127
    %429 = vst.msk [vmem:[#allocation2] sm:$0x80] %vm428, %v426
    %430 = vst.msk [vmem:[#allocation2 + $0x8] sm:$0x80] %vm428, %v427
    %v433 = vrot.slane %v427, 7
    %436 = vst.msk [vmem:[#allocation10 - $0x7] sm:$0x80] %vm428, %v426
    %437 = vst.msk [vmem:[#allocation10 + $0x1] sm:$0x1] %vm157, %v433
    %v438 = vld [vmem:[#allocation6] sm:$0xff]
    %v439 = vld [vmem:[#allocation6 + $0x8] sm:$0xff]
    %v440 = vld [vmem:[#allocation6 + $0x10] sm:$0xff]
    %v441 = vld [vmem:[#allocation6 + $0x18] sm:$0xff]
    %v442 = vld [vmem:[#allocation8] sm:$0xff]
    %v443 = vld [vmem:[#allocation8 + $0x8] sm:$0xff]
    %v444 = vld [vmem:[#allocation8 + $0x10] sm:$0xff]
    %v445 = vld [vmem:[#allocation8 + $0x18] sm:$0xff]
    %v446 = vld [vmem:[%s6] sm:$0x1]
    %v447 = vld [vmem:[#allocation2] sm:$0xff]
    %v448 = vld [vmem:[#allocation2 + $0x8] sm:$0xff]
    %v450 = vperm.slane %v446, 0
    %v453 = vsel %vm125, %v447, 0
    %v456 = vsel %vm125, %v448, 0
    %458 = vmatpush.msra.mxu0 0.0
    %459 = vmatpush.msra.mxu0 0.0
    %460 = vmatpush.msra.mxu0 0.0
    %461 = vmatpush.msra.mxu0 0.0
    %462 = vmatpush.msra.mxu0 0.0
    %463 = vmatpush.msra.mxu0 0.0
    %464 = vmatpush.msra.mxu0 0.0
    %465 = vmatpush.msra.mxu0 0.0
    %466 = vmatpush.msra.mxu0 0.0
    %467 = vmatpush.msra.mxu0 0.0
    %468 = vmatpush.msra.mxu0 0.0
    %469 = vmatpush.msra.mxu0 0.0
    %470 = vmatpush.msra.mxu0 %v441
    %471 = vmatpush.msra.mxu0 %v440
    %472 = vmatpush.msra.mxu0 %v439
    %473 = vmatpush.msra.mxu0 %v438
    %474 = vmatmul.f32.gmra.mxu0 %v453
    %v475 = vpop.f32.mrf.mxu0
    %v476 = vadd.f32 %v450, %v475
    %477 = vmatmul.f32.gmra.mxu0 %v456
    %v478 = vpop.f32.mrf.mxu0
    %v479 = vadd.f32 %v450, %v478
    %480 = vdwg.mxu0
    %481 = vmatpush.msra.mxu0 0.0
    %482 = vmatpush.msra.mxu0 0.0
    %483 = vmatpush.msra.mxu0 0.0
    %484 = vmatpush.msra.mxu0 0.0
    %485 = vmatpush.msra.mxu0 0.0
    %486 = vmatpush.msra.mxu0 0.0
    %487 = vmatpush.msra.mxu0 0.0
    %488 = vmatpush.msra.mxu0 0.0
    %489 = vmatpush.msra.mxu0 0.0
    %490 = vmatpush.msra.mxu0 0.0
    %491 = vmatpush.msra.mxu0 0.0
    %492 = vmatpush.msra.mxu0 0.0
    %493 = vmatpush.msra.mxu0 %v445
    %494 = vmatpush.msra.mxu0 %v444
    %495 = vmatpush.msra.mxu0 %v443
    %496 = vmatpush.msra.mxu0 %v442
    %497 = vmatmul.f32.gmra.mxu0 %v127
    %v498 = vpop.f32.mrf.mxu0
    %v499 = vadd.f32 0.0, %v498
    %500 = vdwg.mxu0
    %v502 = vrot.slane %v499, 1
    %v505 = vadd.f32 %v476, %v499
    %v506 = vadd.f32 %v479, %v502
    %v507 = vtanh.pop %v505
    %v508 = vtanh.pop %v506
    %509 = vst.msk [vmem:[#allocation2] sm:$0x1] %vm157, %v507
    %510 = vst.msk [vmem:[#allocation2 + $0x8] sm:$0x1] %vm157, %v508
    %v513 = vrot.slane %v508, 7
    %v514 = vsel %vm163, %v513, %v507
    %v515 = vsel %vm125, %v514, 0
    %517 = vmatpush.msra.mxu0 0.0
    %518 = vmatpush.msra.mxu0 0.0
    %519 = vmatpush.msra.mxu0 0.0
    %520 = vmatpush.msra.mxu0 0.0
    %521 = vmatpush.msra.mxu0 0.0
    %522 = vmatpush.msra.mxu0 0.0
    %523 = vmatpush.msra.mxu0 0.0
    %524 = vmatpush.msra.mxu0 0.0
    %525 = vmatpush.msra.mxu0 0.0
    %526 = vmatpush.msra.mxu0 0.0
    %527 = vmatpush.msra.mxu0 0.0
    %528 = vmatpush.msra.mxu0 0.0
    %529 = vmatpush.msra.mxu0 %v445
    %530 = vmatpush.msra.mxu0 %v444
    %531 = vmatpush.msra.mxu0 %v443
    %532 = vmatpush.msra.mxu0 %v442
    %533 = vmatmul.f32.gmra.mxu0 %v515
    %v534 = vpop.f32.mrf.mxu0
    %v535 = vadd.f32 0.0, %v534
    %536 = vdwg.mxu0
    %v538 = vrot.slane %v535, 7
    %v541 = vadd.f32 %v476, %v538
    %v542 = vadd.f32 %v479, %v535
    %v543 = vtanh.pop %v541
    %v544 = vtanh.pop %v542
    %545 = vst.msk [vmem:[#allocation2] sm:$0x2] %vm195, %v543
    %546 = vst.msk [vmem:[#allocation2 + $0x8] sm:$0x2] %vm195, %v544
    %v549 = vrot.slane %v543, 1
    %v550 = vsel %vm163, %v544, %v549
    %v551 = vsel %vm125, %v550, 0
    %553 = vmatpush.msra.mxu0 0.0
    %554 = vmatpush.msra.mxu0 0.0
    %555 = vmatpush.msra.mxu0 0.0
    %556 = vmatpush.msra.mxu0 0.0
    %557 = vmatpush.msra.mxu0 0.0
    %558 = vmatpush.msra.mxu0 0.0
    %559 = vmatpush.msra.mxu0 0.0
    %560 = vmatpush.msra.mxu0 0.0
    %561 = vmatpush.msra.mxu0 0.0
    %562 = vmatpush.msra.mxu0 0.0
    %563 = vmatpush.msra.mxu0 0.0
    %564 = vmatpush.msra.mxu0 0.0
    %565 = vmatpush.msra.mxu0 %v445
    %566 = vmatpush.msra.mxu0 %v444
    %567 = vmatpush.msra.mxu0 %v443
    %568 = vmatpush.msra.mxu0 %v442
    %569 = vmatmul.f32.gmra.mxu0 %v551
    %v570 = vpop.f32.mrf.mxu0
    %v571 = vadd.f32 0.0, %v570
    %572 = vdwg.mxu0
    %v574 = vrot.slane %v571, 6
    %v575 = vrot.slane %v571, 7
    %v578 = vadd.f32 %v476, %v574
    %v579 = vadd.f32 %v479, %v575
    %v580 = vtanh.pop %v578
    %v581 = vtanh.pop %v579
    %582 = vst.msk [vmem:[#allocation2] sm:$0x4] %vm233, %v580
    %583 = vst.msk [vmem:[#allocation2 + $0x8] sm:$0x4] %vm233, %v581
    %v586 = vrot.slane %v580, 2
    %v587 = vrot.slane %v581, 1
    %v588 = vsel %vm163, %v587, %v586
    %v589 = vsel %vm125, %v588, 0
    %591 = vmatpush.msra.mxu0 0.0
    %592 = vmatpush.msra.mxu0 0.0
    %593 = vmatpush.msra.mxu0 0.0
    %594 = vmatpush.msra.mxu0 0.0
    %595 = vmatpush.msra.mxu0 0.0
    %596 = vmatpush.msra.mxu0 0.0
    %597 = vmatpush.msra.mxu0 0.0
    %598 = vmatpush.msra.mxu0 0.0
    %599 = vmatpush.msra.mxu0 0.0
    %600 = vmatpush.msra.mxu0 0.0
    %601 = vmatpush.msra.mxu0 0.0
    %602 = vmatpush.msra.mxu0 0.0
    %603 = vmatpush.msra.mxu0 %v445
    %604 = vmatpush.msra.mxu0 %v444
    %605 = vmatpush.msra.mxu0 %v443
    %606 = vmatpush.msra.mxu0 %v442
    %607 = vmatmul.f32.gmra.mxu0 %v589
    %v608 = vpop.f32.mrf.mxu0
    %v609 = vadd.f32 0.0, %v608
    %610 = vdwg.mxu0
    %v612 = vrot.slane %v609, 5
    %v613 = vrot.slane %v609, 6
    %v616 = vadd.f32 %v476, %v612
    %v617 = vadd.f32 %v479, %v613
    %v618 = vtanh.pop %v616
    %v619 = vtanh.pop %v617
    %620 = vst.msk [vmem:[#allocation2] sm:$0x8] %vm272, %v618
    %621 = vst.msk [vmem:[#allocation2 + $0x8] sm:$0x8] %vm272, %v619
    %v624 = vrot.slane %v618, 3
    %v625 = vrot.slane %v619, 2
    %v626 = vsel %vm163, %v625, %v624
    %v627 = vsel %vm125, %v626, 0
    %629 = vmatpush.msra.mxu0 0.0
    %630 = vmatpush.msra.mxu0 0.0
    %631 = vmatpush.msra.mxu0 0.0
    %632 = vmatpush.msra.mxu0 0.0
    %633 = vmatpush.msra.mxu0 0.0
    %634 = vmatpush.msra.mxu0 0.0
    %635 = vmatpush.msra.mxu0 0.0
    %636 = vmatpush.msra.mxu0 0.0
    %637 = vmatpush.msra.mxu0 0.0
    %638 = vmatpush.msra.mxu0 0.0
    %639 = vmatpush.msra.mxu0 0.0
    %640 = vmatpush.msra.mxu0 0.0
    %641 = vmatpush.msra.mxu0 %v445
    %642 = vmatpush.msra.mxu0 %v444
    %643 = vmatpush.msra.mxu0 %v443
    %644 = vmatpush.msra.mxu0 %v442
    %645 = vmatmul.f32.gmra.mxu0 %v627
    %v646 = vpop.f32.mrf.mxu0
    %v647 = vadd.f32 0.0, %v646
    %648 = vdwg.mxu0
    %v650 = vrot.slane %v647, 4
    %v651 = vrot.slane %v647, 5
    %v654 = vadd.f32 %v476, %v650
    %v655 = vadd.f32 %v479, %v651
    %v656 = vtanh.pop %v654
    %v657 = vtanh.pop %v655
    %658 = vst.msk [vmem:[#allocation2] sm:$0x10] %vm311, %v656
    %659 = vst.msk [vmem:[#allocation2 + $0x8] sm:$0x10] %vm311, %v657
    %v662 = vrot.slane %v656, 4
    %v663 = vrot.slane %v657, 3
    %v664 = vsel %vm163, %v663, %v662
    %v665 = vsel %vm125, %v664, 0
    %667 = vmatpush.msra.mxu0 0.0
    %668 = vmatpush.msra.mxu0 0.0
    %669 = vmatpush.msra.mxu0 0.0
    %670 = vmatpush.msra.mxu0 0.0
    %671 = vmatpush.msra.mxu0 0.0
    %672 = vmatpush.msra.mxu0 0.0
    %673 = vmatpush.msra.mxu0 0.0
    %674 = vmatpush.msra.mxu0 0.0
    %675 = vmatpush.msra.mxu0 0.0
    %676 = vmatpush.msra.mxu0 0.0
    %677 = vmatpush.msra.mxu0 0.0
    %678 = vmatpush.msra.mxu0 0.0
    %679 = vmatpush.msra.mxu0 %v445
    %680 = vmatpush.msra.mxu0 %v444
    %681 = vmatpush.msra.mxu0 %v443
    %682 = vmatpush.msra.mxu0 %v442
    %683 = vmatmul.f32.gmra.mxu0 %v665
    %v684 = vpop.f32.mrf.mxu0
    %v685 = vadd.f32 0.0, %v684
    %686 = vdwg.mxu0
    %v688 = vrot.slane %v685, 3
    %v689 = vrot.slane %v685, 4
    %v692 = vadd.f32 %v476, %v688
    %v693 = vadd.f32 %v479, %v689
    %v694 = vtanh.pop %v692
    %v695 = vtanh.pop %v693
    %696 = vst.msk [vmem:[#allocation2] sm:$0x20] %vm350, %v694
    %697 = vst.msk [vmem:[#allocation2 + $0x8] sm:$0x20] %vm350, %v695
    %v700 = vrot.slane %v694, 5
    %v701 = vrot.slane %v695, 4
    %v702 = vsel %vm163, %v701, %v700
    %v703 = vsel %vm125, %v702, 0
    %705 = vmatpush.msra.mxu0 0.0
    %706 = vmatpush.msra.mxu0 0.0
    %707 = vmatpush.msra.mxu0 0.0
    %708 = vmatpush.msra.mxu0 0.0
    %709 = vmatpush.msra.mxu0 0.0
    %710 = vmatpush.msra.mxu0 0.0
    %711 = vmatpush.msra.mxu0 0.0
    %712 = vmatpush.msra.mxu0 0.0
    %713 = vmatpush.msra.mxu0 0.0
    %714 = vmatpush.msra.mxu0 0.0
    %715 = vmatpush.msra.mxu0 0.0
    %716 = vmatpush.msra.mxu0 0.0
    %717 = vmatpush.msra.mxu0 %v445
    %718 = vmatpush.msra.mxu0 %v444
    %719 = vmatpush.msra.mxu0 %v443
    %720 = vmatpush.msra.mxu0 %v442
    %721 = vmatmul.f32.gmra.mxu0 %v703
    %v722 = vpop.f32.mrf.mxu0
    %v723 = vadd.f32 0.0, %v722
    %724 = vdwg.mxu0
    %v726 = vrot.slane %v723, 2
    %v727 = vrot.slane %v723, 3
    %v730 = vadd.f32 %v476, %v726
    %v731 = vadd.f32 %v479, %v727
    %v732 = vtanh.pop %v730
    %v733 = vtanh.pop %v731
    %734 = vst.msk [vmem:[#allocation2] sm:$0x40] %vm389, %v732
    %735 = vst.msk [vmem:[#allocation2 + $0x8] sm:$0x40] %vm389, %v733
    %v738 = vrot.slane %v732, 6
    %v739 = vrot.slane %v733, 5
    %v740 = vsel %vm163, %v739, %v738
    %v741 = vsel %vm125, %v740, 0
    %743 = vmatpush.msra.mxu0 0.0
    %744 = vmatpush.msra.mxu0 0.0
    %745 = vmatpush.msra.mxu0 0.0
    %746 = vmatpush.msra.mxu0 0.0
    %747 = vmatpush.msra.mxu0 0.0
    %748 = vmatpush.msra.mxu0 0.0
    %749 = vmatpush.msra.mxu0 0.0
    %750 = vmatpush.msra.mxu0 0.0
    %751 = vmatpush.msra.mxu0 0.0
    %752 = vmatpush.msra.mxu0 0.0
    %753 = vmatpush.msra.mxu0 0.0
    %754 = vmatpush.msra.mxu0 0.0
    %755 = vmatpush.msra.mxu0 %v445
    %756 = vmatpush.msra.mxu0 %v444
    %757 = vmatpush.msra.mxu0 %v443
    %758 = vmatpush.msra.mxu0 %v442
    %759 = vmatmul.f32.gmra.mxu0 %v741
    %v760 = vpop.f32.mrf.mxu0
    %v761 = vadd.f32 0.0, %v760
    %762 = vdwg.mxu0
    %v764 = vrot.slane %v761, 1
    %v765 = vrot.slane %v761, 2
    %v768 = vadd.f32 %v476, %v764
    %v769 = vadd.f32 %v479, %v765
    %v770 = vtanh.pop %v768
    %v771 = vtanh.pop %v769
    %772 = vst.msk [vmem:[#allocation2] sm:$0x80] %vm428, %v770
    %773 = vst.msk [vmem:[#allocation2 + $0x8] sm:$0x80] %vm428, %v771
    %v776 = vrot.slane %v771, 7
    %s779 = scalar_lea.vmem [#allocation10], 2
    %780 = vst.msk [vmem:[%s779 - $0x7] sm:$0x80] %vm428, %v770
    %781 = vst.msk [vmem:[%s779 + $0x1] sm:$0x1] %vm157, %v776
    %v782 = vld [vmem:[#allocation2] sm:$0xff]
    %v783 = vld [vmem:[#allocation2 + $0x8] sm:$0xff]
    %v784 = vld [vmem:[%s7] sm:$0xff]
    %v785 = vld [vmem:[%s7 + $0x8] sm:$0xff]
    %v786 = vld [vmem:[%s7 + $0x10] sm:$0xff]
    %v787 = vld [vmem:[%s7 + $0x18] sm:$0xff]
    %v788 = vld [vmem:[%s8] sm:$0x1]
    %v790 = vperm.slane %v788, 0
    %v793 = vsel %vm125, %v782, 0
    %v796 = vsel %vm125, %v783, 0
    %798 = vmatpush.msra.mxu0 0.0
    %799 = vmatpush.msra.mxu0 0.0
    %800 = vmatpush.msra.mxu0 0.0
    %801 = vmatpush.msra.mxu0 0.0
    %802 = vmatpush.msra.mxu0 0.0
    %803 = vmatpush.msra.mxu0 0.0
    %804 = vmatpush.msra.mxu0 0.0
    %805 = vmatpush.msra.mxu0 0.0
    %806 = vmatpush.msra.mxu0 0.0
    %807 = vmatpush.msra.mxu0 0.0
    %808 = vmatpush.msra.mxu0 0.0
    %809 = vmatpush.msra.mxu0 0.0
    %810 = vmatpush.msra.mxu0 %v787
    %811 = vmatpush.msra.mxu0 %v786
    %812 = vmatpush.msra.mxu0 %v785
    %813 = vmatpush.msra.mxu0 %v784
    %814 = vmatmul.f32.gmra.mxu0 %v793
    %v815 = vpop.f32.mrf.mxu0
    %v816 = vadd.f32 %v790, %v815
    %817 = vmatmul.f32.gmra.mxu0 %v796
    %v818 = vpop.f32.mrf.mxu0
    %v819 = vadd.f32 %v790, %v818
    %820 = vdwg.mxu0
    %vm821 = vcmask 80896
    %822 = vst.msk [vmem:[#allocation9] sm:$0xff] %vm821, %v816
    %823 = vst.msk [vmem:[#allocation9 + $0x8] sm:$0xff] %vm821, %v819
    // Predicated region
    $region50: #{tpu_custom_call.1} parent=1 // pred_check
      _
    $region51: #{tpu_custom_call.1} parent=1 // pred_check_branch
      %825 = sbr.rel (0) target = $region53
    $region52: #{tpu_custom_call.1} parent=1 // pred_region
      %827 = vsyncadd [#allocation5], 0
      %s828 = sshll.u32 [#allocation9], 4
      %s829 = int_to_ptr.vmem [resolvable:$true] %s828
      %s830 = sshll.u32 %s9, 4
      %s831 = int_to_ptr.hbm [resolvable:$true] %s830
      %836 = dma.vmem_to_hbm [thread:$0]  %s829, 256, %s831, [#allocation5], 128, 128, 8
    $region53: #{tpu_custom_call.1} parent=1 // pred_fallthru
      _
    // Predicated region
    $region54: #{tpu_custom_call.1} parent=1 // pred_check
      _
    $region55: #{tpu_custom_call.1} parent=1 // pred_check_branch
      %838 = sbr.rel (0) target = $region57
    $region56: #{tpu_custom_call.1} parent=1 // pred_region
      %840 = vsyncadd [#allocation11], 0
      %s841 = sshll.u32 [#allocation10], 4
      %s842 = int_to_ptr.vmem [resolvable:$true] %s841
      %s843 = sshll.u32 %s10, 4
      %s844 = int_to_ptr.hbm [resolvable:$true] %s843
      %849 = dma.vmem_to_hbm [thread:$0]  %s842, 64, %s844, [#allocation11], 32, 32, 2
    $region57: #{tpu_custom_call.1} parent=1 // pred_fallthru
      _
    // Predicated region
    $region58: #{tpu_custom_call.1} parent=1 // pred_check
      _
    $region59: #{tpu_custom_call.1} parent=1 // pred_check_branch
      %851 = sbr.rel (0) target = $region61
    $region60: #{tpu_custom_call.1} parent=1 // pred_region
      %853 = dma.done [#allocation5], 256
    $region61: #{tpu_custom_call.1} parent=1 // pred_fallthru
      _
    // Predicated region
    $region62: #{tpu_custom_call.1} parent=1 // pred_check
      _
    $region63: #{tpu_custom_call.1} parent=1 // pred_check_branch
      %855 = sbr.rel (0) target = $region65
    $region64: #{tpu_custom_call.1} parent=1 // pred_region
      %857 = dma.done [#allocation11], 64
    $region65: #{tpu_custom_call.1} parent=1 // pred_fallthru
      _
    %858 = vsyncpa [#allocation4], 1
    %859 = vsyncpa [#allocation7], 1
    %860 = vsyncpa [#allocation5], 1
    %861 = vsyncpa [#allocation11], 1

</llo_original>
